<compile_context>
chip_gen: v5e
topology: v5e:2x2
jax: 0.10.0
libtpu: 0.0.40
codegen_flags: <defaults>
</compile_context>

<pallas_src>
import jax
import jax.numpy as jnp
from jax.experimental import pallas as pl
from jax.experimental.pallas import tpu as pltpu

_LANE = 128  # head lane-padding target (one full lane group)


# ---------------------------------------------------------------------------
# In-kernel helpers (traced inside the Pallas kernel body).
# ---------------------------------------------------------------------------
def _layernorm(h, gamma, beta, eps=1e-5):
    # Matches torch.nn.LayerNorm (biased variance, eps=1e-5) with one-pass
    # statistics; variance is clamped at 0 to guard against f32 cancellation
    # (E[h^2] - mean^2 can go slightly negative).
    inv_n = 1.0 / h.shape[-1]
    mean = jnp.sum(h, axis=-1, keepdims=True) * inv_n
    mean_sq = jnp.sum(h * h, axis=-1, keepdims=True) * inv_n
    var = jnp.maximum(mean_sq - mean * mean, 0.0)
    return (h - mean) * jax.lax.rsqrt(var + eps) * gamma + beta


def _leaky_relu(h, negative_slope=0.2):
    # max + mul: one fewer VALU op per element than cmp + select.
    return jnp.maximum(h, negative_slope * h)


# ---------------------------------------------------------------------------
# Pallas kernel: whole MLP hot path (4 matmuls + 3 layernorms + 3 lrelus).
# Weights arrive as bf16; activations are cast to bf16 for the MXU, with f32
# accumulation and f32 element-wise math.  Output is stored batch-major
# ([dim_output, rows]) so the writeback slab is tiny and lane-dense.
# ---------------------------------------------------------------------------
def discriminator_kernel(x_ref,
                         w1_ref, b1_ref, g1_ref, be1_ref,
                         w2_ref, b2_ref, g2_ref, be2_ref,
                         w3_ref, b3_ref, g3_ref, be3_ref,
                         w4_ref, b4_ref,
                         o_ref):
    h = x_ref[...].astype(jnp.bfloat16)

    # Block 1: Linear -> LayerNorm -> LeakyReLU
    h = jnp.dot(h, w1_ref[...], preferred_element_type=jnp.float32) + b1_ref[...]
    h = _leaky_relu(_layernorm(h, g1_ref[...], be1_ref[...]))

    # Block 2
    h = jnp.dot(h.astype(jnp.bfloat16), w2_ref[...],
                preferred_element_type=jnp.float32) + b2_ref[...]
    h = _leaky_relu(_layernorm(h, g2_ref[...], be2_ref[...]))

    # Block 3
    h = jnp.dot(h.astype(jnp.bfloat16), w3_ref[...],
                preferred_element_type=jnp.float32) + b3_ref[...]
    h = _leaky_relu(_layernorm(h, g3_ref[...], be3_ref[...]))

    # Output head (no norm / act).  w4/b4 are zero-padded to 128 lanes so the
    # matmul is lane-dense; the result is transposed (aligned [rows,128] ->
    # [128,rows] XLU transpose, otherwise-idle slot) and only the real head
    # rows are stored.  NOTE: for a partial final batch tile the tail rows of
    # `out` are garbage, but they land in masked-off output lanes (all math
    # above is strictly row-wise, nothing propagates across rows).
    out = jnp.dot(h.astype(jnp.bfloat16), w4_ref[...],
                  preferred_element_type=jnp.float32) + b4_ref[...]
    dim_out = o_ref.shape[0]
    o_ref[...] = out.T[:dim_out, :].astype(o_ref.dtype)


# ---------------------------------------------------------------------------
# Wrapper.
#   * B <= block_m : single invocation, no grid (latency path).
#   * B  > block_m : batch tiled over a "parallel" grid axis with
#                    grid = cdiv(B, block_m) (no input padding; Pallas masks
#                    the partial final block).  Weights/biases use constant
#                    index maps so they stay VMEM-resident across tiles.
# Returns [B, dim_output] (kernel emits [dim_output, B]; the wrapper
# transpose is a tiny op compared to the old [B, 128] slice).
# ---------------------------------------------------------------------------
def discriminator_forward(x, params, dim_output, *, block_m=512):
    batch, dim_in = x.shape

    ordered = [
        x,
        params["w1"], params["b1"], params["g1"], params["be1"],
        params["w2"], params["b2"], params["g2"], params["be2"],
        params["w3"], params["b3"], params["g3"], params["be3"],
        params["w4"], params["b4"],
    ]

    if batch <= block_m:
        # Small problem: everything fits in VMEM; skip the pipeline entirely.
        out_t = pl.pallas_call(
            discriminator_kernel,
            out_shape=jax.ShapeDtypeStruct((dim_output, batch), jnp.float32),
            in_specs=[pl.BlockSpec(memory_space=pltpu.MemorySpace.VMEM)]
                     * len(ordered),
            out_specs=pl.BlockSpec(memory_space=pltpu.MemorySpace.VMEM),
        )(*ordered)
        return out_t.T

    # Large batch: tile the batch dimension.  Non-divisible batches use a
    # partial final block (no wrapper-side jnp.pad of x).
    grid = (pl.cdiv(batch, block_m),)

    def const_spec(arr):
        # Full-array block, same block index every step -> stays VMEM-resident.
        return pl.BlockSpec(arr.shape, lambda i: (0,) * arr.ndim)

    in_specs = [pl.BlockSpec((block_m, dim_in), lambda i: (i, 0))]
    in_specs += [const_spec(a) for a in ordered[1:]]

    out_t = pl.pallas_call(
        discriminator_kernel,
        out_shape=jax.ShapeDtypeStruct((dim_output, batch), jnp.float32),
        grid=grid,
        in_specs=in_specs,
        out_specs=pl.BlockSpec((dim_output, block_m), lambda i: (0, i)),
        compiler_params=pltpu.CompilerParams(
            # Megacore split on v7x; measured no-op (harmless) on v5e/v6e.
            # VMEM footprint at block_m=512 is ~2 MiB total, far below even
            # v5e's 16 MiB scoped default, so no vmem_limit_bytes override.
            dimension_semantics=("parallel",)),
    )(*ordered)
    return out_t.T


# ---------------------------------------------------------------------------
# Deterministic parameter construction (PyTorch-style Linear init shapes).
# Weights stored in bf16 (halves HBM->VMEM traffic); biases / LN params f32.
# Head weight/bias zero-padded to a 128-lane-dense width.
# ---------------------------------------------------------------------------
def make_params(key, dim_input, dim_output):
    dims = [dim_input, dim_input // 2, dim_input // 4, dim_input // 8]
    params = {}
    for li in range(3):
        fan_in, fan_out = dims[li], dims[li + 1]
        key, kw, kb = jax.random.split(key, 3)
        bound = 1.0 / (fan_in ** 0.5)
        w = jax.random.uniform(kw, (fan_in, fan_out), jnp.float32, -bound, bound)
        params[f"w{li + 1}"] = w.astype(jnp.bfloat16)        # [in, out]
        params[f"b{li + 1}"] = jax.random.uniform(
            kb, (1, fan_out), jnp.float32, -bound, bound)
        params[f"g{li + 1}"] = jnp.ones((1, fan_out), jnp.float32)
        params[f"be{li + 1}"] = jnp.zeros((1, fan_out), jnp.float32)

    # Output head, padded to a multiple of 128 output lanes.
    fan_in = dims[3]
    n_pad = max(_LANE, ((dim_output + _LANE - 1) // _LANE) * _LANE)
    key, kw, kb = jax.random.split(key, 3)
    bound = 1.0 / (fan_in ** 0.5)
    w4 = jax.random.uniform(kw, (fan_in, dim_output), jnp.float32, -bound, bound)
    b4 = jax.random.uniform(kb, (1, dim_output), jnp.float32, -bound, bound)
    params["w4"] = jnp.pad(w4, ((0, 0), (0, n_pad - dim_output))).astype(jnp.bfloat16)
    params["b4"] = jnp.pad(b4, ((0, 0), (0, n_pad - dim_output)))
    return params


# ---------------------------------------------------------------------------
# Pure-JAX f32 reference (classic two-pass LayerNorm) for correctness checks.
# Uses the same (bf16-rounded) weights, up-cast to f32.
# ---------------------------------------------------------------------------
def _layernorm_ref(h, gamma, beta, eps=1e-5):
    mean = jnp.mean(h, axis=-1, keepdims=True)
    var = jnp.mean(jnp.square(h - mean), axis=-1, keepdims=True)
    return (h - mean) * jax.lax.rsqrt(var + eps) * gamma + beta


def reference_forward(x, p, dim_output):
    h = x
    for li in range(1, 4):
        h = h @ p[f"w{li}"].astype(jnp.float32) + p[f"b{li}"]
        h = _layernorm_ref(h, p[f"g{li}"], p[f"be{li}"])
        h = jnp.maximum(h, 0.2 * h)
    out = h @ p["w4"].astype(jnp.float32) + p["b4"]
    return out[:, :dim_output]


if __name__ == "__main__":
    DIM_INPUT = 256      # -> hidden dims 128, 64, 32
    DIM_OUTPUT = 1

    key = jax.random.PRNGKey(0)
    key, kx_small, kx_big = jax.random.split(key, 3)
    params = make_params(key, DIM_INPUT, DIM_OUTPUT)

    # Path 1: tiny batch -> single invocation, no grid.
    x_small = jax.random.normal(kx_small, (8, DIM_INPUT), jnp.float32)
    out_small = jax.block_until_ready(
        discriminator_forward(x_small, params, DIM_OUTPUT))
    ref_small = reference_forward(x_small, params, DIM_OUTPUT)
    assert out_small.shape == (8, DIM_OUTPUT)
    # bf16 MXU path vs f32 reference -> loose tolerance.
    assert jnp.allclose(out_small, ref_small, atol=5e-2, rtol=5e-2), \
        "small-batch mismatch vs reference"

    # Path 2: larger batch -> batch tiled over a 'parallel' grid axis,
    # deliberately non-divisible (300 = 2*128 + 44) to exercise the
    # partial-final-tile path (no input padding, masked partial store).
    x_big = jax.random.normal(kx_big, (300, DIM_INPUT), jnp.float32)
    out_big = jax.block_until_ready(
        discriminator_forward(x_big, params, DIM_OUTPUT, block_m=128))
    ref_big = reference_forward(x_big, params, DIM_OUTPUT)
    assert out_big.shape == (300, DIM_OUTPUT)
    assert jnp.allclose(out_big, ref_big, atol=5e-2, rtol=5e-2), \
        "batched mismatch vs reference"
    assert bool(jnp.all(jnp.isfinite(out_big))), "non-finite values in output"

    print("KERNEL_OK")
</pallas_src>

<mosaic_0001>
module attributes {stable_mosaic.version = 11 : i64} {
  func.func @discriminator_kernel(%arg0: memref<8x256xf32, #tpu.memory_space<vmem>>, %arg1: memref<256x128xbf16, #tpu.memory_space<vmem>>, %arg2: memref<1x128xf32, #tpu.memory_space<vmem>>, %arg3: memref<1x128xf32, #tpu.memory_space<vmem>>, %arg4: memref<1x128xf32, #tpu.memory_space<vmem>>, %arg5: memref<128x64xbf16, #tpu.memory_space<vmem>>, %arg6: memref<1x64xf32, #tpu.memory_space<vmem>>, %arg7: memref<1x64xf32, #tpu.memory_space<vmem>>, %arg8: memref<1x64xf32, #tpu.memory_space<vmem>>, %arg9: memref<64x32xbf16, #tpu.memory_space<vmem>>, %arg10: memref<1x32xf32, #tpu.memory_space<vmem>>, %arg11: memref<1x32xf32, #tpu.memory_space<vmem>>, %arg12: memref<1x32xf32, #tpu.memory_space<vmem>>, %arg13: memref<32x128xbf16, #tpu.memory_space<vmem>>, %arg14: memref<1x128xf32, #tpu.memory_space<vmem>>, %arg15: memref<1x8xf32, #tpu.memory_space<vmem>>) attributes {dimension_semantics = [], scalar_prefetch = 0 : i64, scratch_operands = 0 : i64, tpu.core_type = #tpu.core_type<tc>} {
    %c0 = arith.constant 0 : index
    %c0_0 = arith.constant 0 : index
    %0 = vector.load %arg0[%c0, %c0_0] : memref<8x256xf32, #tpu.memory_space<vmem>>, vector<8x256xf32>
    %1 = arith.truncf %0 : vector<8x256xf32> to vector<8x256xbf16>
    %c0_1 = arith.constant 0 : index
    %c0_2 = arith.constant 0 : index
    %2 = vector.load %arg1[%c0_1, %c0_2] : memref<256x128xbf16, #tpu.memory_space<vmem>>, vector<256x128xbf16>
    %cst = arith.constant dense<0.000000e+00> : vector<8x128xf32>
    %3 = tpu.matmul %1, %2, %cst {dimension_numbers = #tpu.dot_dimension_numbers<[1], [0], [0], [1], [0, 0, 1, 1], [], []>} : vector<8x256xbf16>, vector<256x128xbf16>, vector<8x128xf32> -> vector<8x128xf32>
    %c0_3 = arith.constant 0 : index
    %c0_4 = arith.constant 0 : index
    %4 = vector.load %arg2[%c0_3, %c0_4] : memref<1x128xf32, #tpu.memory_space<vmem>>, vector<1x128xf32>
    %5 = vector.broadcast %4 : vector<1x128xf32> to vector<8x128xf32>
    %6 = arith.addf %3, %5 : vector<8x128xf32>
    %c0_5 = arith.constant 0 : index
    %c0_6 = arith.constant 0 : index
    %7 = vector.load %arg3[%c0_5, %c0_6] : memref<1x128xf32, #tpu.memory_space<vmem>>, vector<1x128xf32>
    %c0_7 = arith.constant 0 : index
    %c0_8 = arith.constant 0 : index
    %8 = vector.load %arg4[%c0_7, %c0_8] : memref<1x128xf32, #tpu.memory_space<vmem>>, vector<1x128xf32>
    %cst_9 = arith.constant dense<0.000000e+00> : vector<8xf32>
    %9 = vector.multi_reduction <add>, %6, %cst_9 [1] : vector<8x128xf32> to vector<8xf32>
    %10 = vector.shape_cast %9 : vector<8xf32> to vector<8x1xf32>
    %cst_10 = arith.constant 7.812500e-03 : f32
    %11 = vector.broadcast %cst_10 : f32 to vector<8x1xf32>
    %12 = arith.mulf %10, %11 : vector<8x1xf32>
    %13 = arith.mulf %6, %6 : vector<8x128xf32>
    %cst_11 = arith.constant dense<0.000000e+00> : vector<8xf32>
    %14 = vector.multi_reduction <add>, %13, %cst_11 [1] : vector<8x128xf32> to vector<8xf32>
    %15 = vector.shape_cast %14 : vector<8xf32> to vector<8x1xf32>
    %cst_12 = arith.constant 7.812500e-03 : f32
    %16 = vector.broadcast %cst_12 : f32 to vector<8x1xf32>
    %17 = arith.mulf %15, %16 : vector<8x1xf32>
    %18 = arith.mulf %12, %12 : vector<8x1xf32>
    %19 = arith.subf %17, %18 : vector<8x1xf32>
    %cst_13 = arith.constant 0.000000e+00 : f32
    %20 = vector.broadcast %cst_13 : f32 to vector<8x1xf32>
    %21 = arith.maximumf %19, %20 : vector<8x1xf32>
    %22 = vector.broadcast %12 : vector<8x1xf32> to vector<8x128xf32>
    %23 = arith.subf %6, %22 : vector<8x128xf32>
    %cst_14 = arith.constant 9.99999974E-6 : f32
    %24 = vector.broadcast %cst_14 : f32 to vector<8x1xf32>
    %25 = arith.addf %21, %24 : vector<8x1xf32>
    %26 = math.rsqrt %25 : vector<8x1xf32>
    %27 = vector.broadcast %26 : vector<8x1xf32> to vector<8x128xf32>
    %28 = arith.mulf %23, %27 : vector<8x128xf32>
    %29 = vector.broadcast %7 : vector<1x128xf32> to vector<8x128xf32>
    %30 = arith.mulf %28, %29 : vector<8x128xf32>
    %31 = vector.broadcast %8 : vector<1x128xf32> to vector<8x128xf32>
    %32 = arith.addf %30, %31 : vector<8x128xf32>
    %cst_15 = arith.constant 2.000000e-01 : f32
    %33 = vector.broadcast %cst_15 : f32 to vector<8x128xf32>
    %34 = arith.mulf %33, %32 : vector<8x128xf32>
    %35 = arith.maximumf %32, %34 : vector<8x128xf32>
    %36 = arith.truncf %35 : vector<8x128xf32> to vector<8x128xbf16>
    %c0_16 = arith.constant 0 : index
    %c0_17 = arith.constant 0 : index
    %37 = vector.load %arg5[%c0_16, %c0_17] : memref<128x64xbf16, #tpu.memory_space<vmem>>, vector<128x64xbf16>
    %cst_18 = arith.constant dense<0.000000e+00> : vector<8x64xf32>
    %38 = tpu.matmul %36, %37, %cst_18 {dimension_numbers = #tpu.dot_dimension_numbers<[1], [0], [0], [1], [0, 0, 1, 1], [], []>} : vector<8x128xbf16>, vector<128x64xbf16>, vector<8x64xf32> -> vector<8x64xf32>
    %c0_19 = arith.constant 0 : index
    %c0_20 = arith.constant 0 : index
    %39 = vector.load %arg6[%c0_19, %c0_20] : memref<1x64xf32, #tpu.memory_space<vmem>>, vector<1x64xf32>
    %40 = vector.broadcast %39 : vector<1x64xf32> to vector<8x64xf32>
    %41 = arith.addf %38, %40 : vector<8x64xf32>
    %c0_21 = arith.constant 0 : index
    %c0_22 = arith.constant 0 : index
    %42 = vector.load %arg7[%c0_21, %c0_22] : memref<1x64xf32, #tpu.memory_space<vmem>>, vector<1x64xf32>
    %c0_23 = arith.constant 0 : index
    %c0_24 = arith.constant 0 : index
    %43 = vector.load %arg8[%c0_23, %c0_24] : memref<1x64xf32, #tpu.memory_space<vmem>>, vector<1x64xf32>
    %cst_25 = arith.constant dense<0.000000e+00> : vector<8xf32>
    %44 = vector.multi_reduction <add>, %41, %cst_25 [1] : vector<8x64xf32> to vector<8xf32>
    %45 = vector.shape_cast %44 : vector<8xf32> to vector<8x1xf32>
    %cst_26 = arith.constant 1.562500e-02 : f32
    %46 = vector.broadcast %cst_26 : f32 to vector<8x1xf32>
    %47 = arith.mulf %45, %46 : vector<8x1xf32>
    %48 = arith.mulf %41, %41 : vector<8x64xf32>
    %cst_27 = arith.constant dense<0.000000e+00> : vector<8xf32>
    %49 = vector.multi_reduction <add>, %48, %cst_27 [1] : vector<8x64xf32> to vector<8xf32>
    %50 = vector.shape_cast %49 : vector<8xf32> to vector<8x1xf32>
    %cst_28 = arith.constant 1.562500e-02 : f32
    %51 = vector.broadcast %cst_28 : f32 to vector<8x1xf32>
    %52 = arith.mulf %50, %51 : vector<8x1xf32>
    %53 = arith.mulf %47, %47 : vector<8x1xf32>
    %54 = arith.subf %52, %53 : vector<8x1xf32>
    %cst_29 = arith.constant 0.000000e+00 : f32
    %55 = vector.broadcast %cst_29 : f32 to vector<8x1xf32>
    %56 = arith.maximumf %54, %55 : vector<8x1xf32>
    %57 = vector.broadcast %47 : vector<8x1xf32> to vector<8x64xf32>
    %58 = arith.subf %41, %57 : vector<8x64xf32>
    %cst_30 = arith.constant 9.99999974E-6 : f32
    %59 = vector.broadcast %cst_30 : f32 to vector<8x1xf32>
    %60 = arith.addf %56, %59 : vector<8x1xf32>
    %61 = math.rsqrt %60 : vector<8x1xf32>
    %62 = vector.broadcast %61 : vector<8x1xf32> to vector<8x64xf32>
    %63 = arith.mulf %58, %62 : vector<8x64xf32>
    %64 = vector.broadcast %42 : vector<1x64xf32> to vector<8x64xf32>
    %65 = arith.mulf %63, %64 : vector<8x64xf32>
    %66 = vector.broadcast %43 : vector<1x64xf32> to vector<8x64xf32>
    %67 = arith.addf %65, %66 : vector<8x64xf32>
    %cst_31 = arith.constant 2.000000e-01 : f32
    %68 = vector.broadcast %cst_31 : f32 to vector<8x64xf32>
    %69 = arith.mulf %68, %67 : vector<8x64xf32>
    %70 = arith.maximumf %67, %69 : vector<8x64xf32>
    %71 = arith.truncf %70 : vector<8x64xf32> to vector<8x64xbf16>
    %c0_32 = arith.constant 0 : index
    %c0_33 = arith.constant 0 : index
    %72 = vector.load %arg9[%c0_32, %c0_33] : memref<64x32xbf16, #tpu.memory_space<vmem>>, vector<64x32xbf16>
    %cst_34 = arith.constant dense<0.000000e+00> : vector<8x32xf32>
    %73 = tpu.matmul %71, %72, %cst_34 {dimension_numbers = #tpu.dot_dimension_numbers<[1], [0], [0], [1], [0, 0, 1, 1], [], []>} : vector<8x64xbf16>, vector<64x32xbf16>, vector<8x32xf32> -> vector<8x32xf32>
    %c0_35 = arith.constant 0 : index
    %c0_36 = arith.constant 0 : index
    %74 = vector.load %arg10[%c0_35, %c0_36] : memref<1x32xf32, #tpu.memory_space<vmem>>, vector<1x32xf32>
    %75 = vector.broadcast %74 : vector<1x32xf32> to vector<8x32xf32>
    %76 = arith.addf %73, %75 : vector<8x32xf32>
    %c0_37 = arith.constant 0 : index
    %c0_38 = arith.constant 0 : index
    %77 = vector.load %arg11[%c0_37, %c0_38] : memref<1x32xf32, #tpu.memory_space<vmem>>, vector<1x32xf32>
    %c0_39 = arith.constant 0 : index
    %c0_40 = arith.constant 0 : index
    %78 = vector.load %arg12[%c0_39, %c0_40] : memref<1x32xf32, #tpu.memory_space<vmem>>, vector<1x32xf32>
    %cst_41 = arith.constant dense<0.000000e+00> : vector<8xf32>
    %79 = vector.multi_reduction <add>, %76, %cst_41 [1] : vector<8x32xf32> to vector<8xf32>
    %80 = vector.shape_cast %79 : vector<8xf32> to vector<8x1xf32>
    %cst_42 = arith.constant 3.125000e-02 : f32
    %81 = vector.broadcast %cst_42 : f32 to vector<8x1xf32>
    %82 = arith.mulf %80, %81 : vector<8x1xf32>
    %83 = arith.mulf %76, %76 : vector<8x32xf32>
    %cst_43 = arith.constant dense<0.000000e+00> : vector<8xf32>
    %84 = vector.multi_reduction <add>, %83, %cst_43 [1] : vector<8x32xf32> to vector<8xf32>
    %85 = vector.shape_cast %84 : vector<8xf32> to vector<8x1xf32>
    %cst_44 = arith.constant 3.125000e-02 : f32
    %86 = vector.broadcast %cst_44 : f32 to vector<8x1xf32>
    %87 = arith.mulf %85, %86 : vector<8x1xf32>
    %88 = arith.mulf %82, %82 : vector<8x1xf32>
    %89 = arith.subf %87, %88 : vector<8x1xf32>
    %cst_45 = arith.constant 0.000000e+00 : f32
    %90 = vector.broadcast %cst_45 : f32 to vector<8x1xf32>
    %91 = arith.maximumf %89, %90 : vector<8x1xf32>
    %92 = vector.broadcast %82 : vector<8x1xf32> to vector<8x32xf32>
    %93 = arith.subf %76, %92 : vector<8x32xf32>
    %cst_46 = arith.constant 9.99999974E-6 : f32
    %94 = vector.broadcast %cst_46 : f32 to vector<8x1xf32>
    %95 = arith.addf %91, %94 : vector<8x1xf32>
    %96 = math.rsqrt %95 : vector<8x1xf32>
    %97 = vector.broadcast %96 : vector<8x1xf32> to vector<8x32xf32>
    %98 = arith.mulf %93, %97 : vector<8x32xf32>
    %99 = vector.broadcast %77 : vector<1x32xf32> to vector<8x32xf32>
    %100 = arith.mulf %98, %99 : vector<8x32xf32>
    %101 = vector.broadcast %78 : vector<1x32xf32> to vector<8x32xf32>
    %102 = arith.addf %100, %101 : vector<8x32xf32>
    %cst_47 = arith.constant 2.000000e-01 : f32
    %103 = vector.broadcast %cst_47 : f32 to vector<8x32xf32>
    %104 = arith.mulf %103, %102 : vector<8x32xf32>
    %105 = arith.maximumf %102, %104 : vector<8x32xf32>
    %106 = arith.truncf %105 : vector<8x32xf32> to vector<8x32xbf16>
    %c0_48 = arith.constant 0 : index
    %c0_49 = arith.constant 0 : index
    %107 = vector.load %arg13[%c0_48, %c0_49] : memref<32x128xbf16, #tpu.memory_space<vmem>>, vector<32x128xbf16>
    %cst_50 = arith.constant dense<0.000000e+00> : vector<8x128xf32>
    %108 = tpu.matmul %106, %107, %cst_50 {dimension_numbers = #tpu.dot_dimension_numbers<[1], [0], [0], [1], [0, 0, 1, 1], [], []>} : vector<8x32xbf16>, vector<32x128xbf16>, vector<8x128xf32> -> vector<8x128xf32>
    %c0_51 = arith.constant 0 : index
    %c0_52 = arith.constant 0 : index
    %109 = vector.load %arg14[%c0_51, %c0_52] : memref<1x128xf32, #tpu.memory_space<vmem>>, vector<1x128xf32>
    %110 = vector.broadcast %109 : vector<1x128xf32> to vector<8x128xf32>
    %111 = arith.addf %108, %110 : vector<8x128xf32>
    %112 = tpu.transpose %111, [1, 0] : vector<8x128xf32> -> vector<128x8xf32>
    %113 = vector.extract_strided_slice %112 {offsets = [0, 0], sizes = [1, 8], strides = [1, 1]} : vector<128x8xf32> to vector<1x8xf32>
    %c0_53 = arith.constant 0 : index
    %c0_54 = arith.constant 0 : index
    %114 = vector.load %arg15[%c0_53, %c0_54] : memref<1x8xf32, #tpu.memory_space<vmem>>, vector<1x8xf32>
    tpu.vector_store %arg15[%c0_53, %c0_54], %113 {strides = array<i32>} : memref<1x8xf32, #tpu.memory_space<vmem>>, vector<1x8xf32>,
    return
  }
}

</mosaic_0001>

<llo_original>
// kernel: tpu_custom_call.1
$region0: #{tpu_custom_call.1}
  #allocation0 [shape = 'u32[]', space=smem, size = 0x4, offset = 0x4, fixed_abs, tag = 'smem constant byte address 0x4 - core index']
  #allocation1 [shape = 'u32[72,128]{1,0:T(1,128)}', space=vmem, size = 0x9000, scoped, tag = 'internal scratch']
  %s0 = inlined_call_operand.vmem [shape: f32[8,256], index: 0, kind: input, shape index: {}]
  %s1 = inlined_call_operand.hbm [shape: bf16[256,128], index: 1, kind: input, shape index: {}]
  %s2 = inlined_call_operand.vmem [shape: f32[1,128], index: 2, kind: input, shape index: {}]
  %s3 = inlined_call_operand.vmem [shape: f32[1,128], index: 3, kind: input, shape index: {}]
  %s4 = inlined_call_operand.vmem [shape: f32[1,128], index: 4, kind: input, shape index: {}]
  %s5 = inlined_call_operand.vmem [shape: bf16[128,64], index: 5, kind: input, shape index: {}]
  %s6 = inlined_call_operand.vmem [shape: f32[1,64], index: 6, kind: input, shape index: {}]
  %s7 = inlined_call_operand.vmem [shape: f32[1,64], index: 7, kind: input, shape index: {}]
  %s8 = inlined_call_operand.vmem [shape: f32[1,64], index: 8, kind: input, shape index: {}]
  %s9 = inlined_call_operand.vmem [shape: bf16[64,32], index: 9, kind: input, shape index: {}]
  %s10 = inlined_call_operand.vmem [shape: f32[1,32], index: 10, kind: input, shape index: {}]
  %s11 = inlined_call_operand.vmem [shape: f32[1,32], index: 11, kind: input, shape index: {}]
  %s12 = inlined_call_operand.vmem [shape: f32[1,32], index: 12, kind: input, shape index: {}]
  %s13 = inlined_call_operand.vmem [shape: bf16[32,128], index: 13, kind: input, shape index: {}]
  %s14 = inlined_call_operand.vmem [shape: f32[1,128], index: 14, kind: input, shape index: {}]
  %s15 = inlined_call_operand.hbm [shape: f32[1,8], index: 15, kind: output, shape index: {}]
  %s16 = sld [smem:[#allocation0]]
  $region74: #{tpu_custom_call.1} parent=0
    _
  %s18 = ssub.s32 1, %s16
  %s19 = scalar_select 0, %s18, %s16
  $region1: #{tpu_custom_call.1} parent=0
    #allocation2 [shape = 'u8[65536]{0}', space=vmem, size = 0x10000, scoped, tag = 'input window, operand 1, single buffered']
    #allocation3 [shape = 's32[1]{0}', space=sflag, size = 0x4, scoped, tag = 'scoped memory for tpu_custom_call.1']
    #allocation4 [shape = 's32[1]{0}', space=sflag, size = 0x4, scoped, tag = 'scoped memory for tpu_custom_call.1']
    #allocation5 [shape = 'u8[512]{0}', space=vmem, size = 0x400, scoped, tag = 'output window, operand 0, single buffered']
    %20 = vsyncpa [#allocation3], 0
    %21 = vsyncpa [#allocation4], 0
    // Predicated region
    $region2: #{tpu_custom_call.1} parent=1 // pred_check
      _
    $region3: #{tpu_custom_call.1} parent=1 // pred_check_branch
      %23 = sbr.rel (0) target = $region5
    $region4: #{tpu_custom_call.1} parent=1 // pred_region
      _
    $region5: #{tpu_custom_call.1} parent=1 // pred_fallthru
      _
    // Predicated region
    $region6: #{tpu_custom_call.1} parent=1 // pred_check
      _
    $region7: #{tpu_custom_call.1} parent=1 // pred_check_branch
      %25 = sbr.rel (0) target = $region9
    $region8: #{tpu_custom_call.1} parent=1 // pred_region
      %27 = vsyncadd [#allocation3], 0
      %s28 = sshll.u32 %s1, 4
      %s29 = int_to_ptr.hbm [resolvable:$true] %s28
      %s30 = sshll.u32 [#allocation2], 4
      %s31 = int_to_ptr.vmem [resolvable:$true] %s30
      %36 = dma.hbm_to_vmem [thread:$0]  %s29, 2048, %s31, [#allocation3], 64, 64, 4
    $region9: #{tpu_custom_call.1} parent=1 // pred_fallthru
      _
    // Predicated region
    $region10: #{tpu_custom_call.1} parent=1 // pred_check
      _
    $region11: #{tpu_custom_call.1} parent=1 // pred_check_branch
      %38 = sbr.rel (0) target = $region13
    $region12: #{tpu_custom_call.1} parent=1 // pred_region
      _
    $region13: #{tpu_custom_call.1} parent=1 // pred_fallthru
      _
    // Predicated region
    $region14: #{tpu_custom_call.1} parent=1 // pred_check
      _
    $region15: #{tpu_custom_call.1} parent=1 // pred_check_branch
      %40 = sbr.rel (0) target = $region17
    $region16: #{tpu_custom_call.1} parent=1 // pred_region
      _
    $region17: #{tpu_custom_call.1} parent=1 // pred_fallthru
      _
    // Predicated region
    $region18: #{tpu_custom_call.1} parent=1 // pred_check
      _
    $region19: #{tpu_custom_call.1} parent=1 // pred_check_branch
      %42 = sbr.rel (0) target = $region21
    $region20: #{tpu_custom_call.1} parent=1 // pred_region
      _
    $region21: #{tpu_custom_call.1} parent=1 // pred_fallthru
      _
    // Predicated region
    $region22: #{tpu_custom_call.1} parent=1 // pred_check
      _
    $region23: #{tpu_custom_call.1} parent=1 // pred_check_branch
      %44 = sbr.rel (0) target = $region25
    $region24: #{tpu_custom_call.1} parent=1 // pred_region
      _
    $region25: #{tpu_custom_call.1} parent=1 // pred_fallthru
      _
    // Predicated region
    $region26: #{tpu_custom_call.1} parent=1 // pred_check
      _
    $region27: #{tpu_custom_call.1} parent=1 // pred_check_branch
      %46 = sbr.rel (0) target = $region29
    $region28: #{tpu_custom_call.1} parent=1 // pred_region
      _
    $region29: #{tpu_custom_call.1} parent=1 // pred_fallthru
      _
    // Predicated region
    $region30: #{tpu_custom_call.1} parent=1 // pred_check
      _
    $region31: #{tpu_custom_call.1} parent=1 // pred_check_branch
      %48 = sbr.rel (0) target = $region33
    $region32: #{tpu_custom_call.1} parent=1 // pred_region
      _
    $region33: #{tpu_custom_call.1} parent=1 // pred_fallthru
      _
    // Predicated region
    $region34: #{tpu_custom_call.1} parent=1 // pred_check
      _
    $region35: #{tpu_custom_call.1} parent=1 // pred_check_branch
      %50 = sbr.rel (0) target = $region37
    $region36: #{tpu_custom_call.1} parent=1 // pred_region
      _
    $region37: #{tpu_custom_call.1} parent=1 // pred_fallthru
      _
    // Predicated region
    $region38: #{tpu_custom_call.1} parent=1 // pred_check
      _
    $region39: #{tpu_custom_call.1} parent=1 // pred_check_branch
      %52 = sbr.rel (0) target = $region41
    $region40: #{tpu_custom_call.1} parent=1 // pred_region
      _
    $region41: #{tpu_custom_call.1} parent=1 // pred_fallthru
      _
    // Predicated region
    $region42: #{tpu_custom_call.1} parent=1 // pred_check
      _
    $region43: #{tpu_custom_call.1} parent=1 // pred_check_branch
      %54 = sbr.rel (0) target = $region45
    $region44: #{tpu_custom_call.1} parent=1 // pred_region
      _
    $region45: #{tpu_custom_call.1} parent=1 // pred_fallthru
      _
    // Predicated region
    $region46: #{tpu_custom_call.1} parent=1 // pred_check
      _
    $region47: #{tpu_custom_call.1} parent=1 // pred_check_branch
      %56 = sbr.rel (0) target = $region49
    $region48: #{tpu_custom_call.1} parent=1 // pred_region
      _
    $region49: #{tpu_custom_call.1} parent=1 // pred_fallthru
      _
    // Predicated region
    $region50: #{tpu_custom_call.1} parent=1 // pred_check
      _
    $region51: #{tpu_custom_call.1} parent=1 // pred_check_branch
      %58 = sbr.rel (0) target = $region53
    $region52: #{tpu_custom_call.1} parent=1 // pred_region
      _
    $region53: #{tpu_custom_call.1} parent=1 // pred_fallthru
      _
    // Predicated region
    $region54: #{tpu_custom_call.1} parent=1 // pred_check
      _
    $region55: #{tpu_custom_call.1} parent=1 // pred_check_branch
      %60 = sbr.rel (0) target = $region57
    $region56: #{tpu_custom_call.1} parent=1 // pred_region
      _
    $region57: #{tpu_custom_call.1} parent=1 // pred_fallthru
      _
    // Predicated region
    $region58: #{tpu_custom_call.1} parent=1 // pred_check
      _
    $region59: #{tpu_custom_call.1} parent=1 // pred_check_branch
      %62 = sbr.rel (0) target = $region61
    $region60: #{tpu_custom_call.1} parent=1 // pred_region
      _
    $region61: #{tpu_custom_call.1} parent=1 // pred_fallthru
      _
    // Predicated region
    $region62: #{tpu_custom_call.1} parent=1 // pred_check
      _
    $region63: #{tpu_custom_call.1} parent=1 // pred_check_branch
      %64 = sbr.rel (0) target = $region65
    $region64: #{tpu_custom_call.1} parent=1 // pred_region
      %66 = dma.done [#allocation3], 2048
    $region65: #{tpu_custom_call.1} parent=1 // pred_fallthru
      _
    %v68 = vld [vmem:[%s0] sm:$0xff]
    %v69 = vld [vmem:[%s0 + $0x8] sm:$0xff]
    %v70 = vpack.c.bf16 %v68, %v68
    %v71 = vpack.c.bf16 %v69, %v69
    %v72 = vld [vmem:[#allocation2] sm:$0xf]
    %v73 = vld [vmem:[#allocation2 + $0x4] sm:$0xf]
    %v74 = vld [vmem:[#allocation2 + $0x8] sm:$0xf]
    %v75 = vld [vmem:[#allocation2 + $0xc] sm:$0xf]
    %v76 = vld [vmem:[#allocation2 + $0x10] sm:$0xf]
    %v77 = vld [vmem:[#allocation2 + $0x14] sm:$0xf]
    %v78 = vld [vmem:[#allocation2 + $0x18] sm:$0xf]
    %v79 = vld [vmem:[#allocation2 + $0x1c] sm:$0xf]
    %v80 = vld [vmem:[#allocation2 + $0x20] sm:$0xf]
    %v81 = vld [vmem:[#allocation2 + $0x24] sm:$0xf]
    %v82 = vld [vmem:[#allocation2 + $0x28] sm:$0xf]
    %v83 = vld [vmem:[#allocation2 + $0x2c] sm:$0xf]
    %v84 = vld [vmem:[#allocation2 + $0x30] sm:$0xf]
    %v85 = vld [vmem:[#allocation2 + $0x34] sm:$0xf]
    %v86 = vld [vmem:[#allocation2 + $0x38] sm:$0xf]
    %v87 = vld [vmem:[#allocation2 + $0x3c] sm:$0xf]
    %v88 = vld [vmem:[#allocation2 + $0x40] sm:$0xf]
    %v89 = vld [vmem:[#allocation2 + $0x44] sm:$0xf]
    %v90 = vld [vmem:[#allocation2 + $0x48] sm:$0xf]
    %v91 = vld [vmem:[#allocation2 + $0x4c] sm:$0xf]
    %v92 = vld [vmem:[#allocation2 + $0x50] sm:$0xf]
    %v93 = vld [vmem:[#allocation2 + $0x54] sm:$0xf]
    %v94 = vld [vmem:[#allocation2 + $0x58] sm:$0xf]
    %v95 = vld [vmem:[#allocation2 + $0x5c] sm:$0xf]
    %v96 = vld [vmem:[#allocation2 + $0x60] sm:$0xf]
    %v97 = vld [vmem:[#allocation2 + $0x64] sm:$0xf]
    %v98 = vld [vmem:[#allocation2 + $0x68] sm:$0xf]
    %v99 = vld [vmem:[#allocation2 + $0x6c] sm:$0xf]
    %v100 = vld [vmem:[#allocation2 + $0x70] sm:$0xf]
    %v101 = vld [vmem:[#allocation2 + $0x74] sm:$0xf]
    %v102 = vld [vmem:[#allocation2 + $0x78] sm:$0xf]
    %v103 = vld [vmem:[#allocation2 + $0x7c] sm:$0xf]
    %v104 = vld [vmem:[%s2] sm:$0x1]
    %v106 = vperm.slane %v104, 0
    %v140 = vunpack.c.l.b16 %v72
    %v141 = vunpack.c.l.b16 %v73
    %v142 = vunpack.c.l.b16 %v74
    %v143 = vunpack.c.l.b16 %v75
    %v144 = vunpack.c.l.b16 %v76
    %v145 = vunpack.c.l.b16 %v77
    %v146 = vunpack.c.l.b16 %v78
    %v147 = vunpack.c.l.b16 %v79
    %v148 = vunpack.c.l.b16 %v80
    %v149 = vunpack.c.l.b16 %v81
    %v150 = vunpack.c.l.b16 %v82
    %v151 = vunpack.c.l.b16 %v83
    %v152 = vunpack.c.l.b16 %v84
    %v153 = vunpack.c.l.b16 %v85
    %v154 = vunpack.c.l.b16 %v86
    %v155 = vunpack.c.l.b16 %v87
    %v156 = vunpack.c.l.b16 %v88
    %v157 = vunpack.c.l.b16 %v89
    %v158 = vunpack.c.l.b16 %v90
    %v159 = vunpack.c.l.b16 %v91
    %v160 = vunpack.c.l.b16 %v92
    %v161 = vunpack.c.l.b16 %v93
    %v162 = vunpack.c.l.b16 %v94
    %v163 = vunpack.c.l.b16 %v95
    %v164 = vunpack.c.l.b16 %v96
    %v165 = vunpack.c.l.b16 %v97
    %v166 = vunpack.c.l.b16 %v98
    %v167 = vunpack.c.l.b16 %v99
    %v168 = vunpack.c.l.b16 %v100
    %v169 = vunpack.c.l.b16 %v101
    %v170 = vunpack.c.l.b16 %v102
    %v171 = vunpack.c.l.b16 %v103
    %v172 = vpack.c.b16 %v141, %v140
    %v173 = vpack.c.b16 %v143, %v142
    %v174 = vpack.c.b16 %v145, %v144
    %v175 = vpack.c.b16 %v147, %v146
    %v176 = vpack.c.b16 %v149, %v148
    %v177 = vpack.c.b16 %v151, %v150
    %v178 = vpack.c.b16 %v153, %v152
    %v179 = vpack.c.b16 %v155, %v154
    %v180 = vpack.c.b16 %v157, %v156
    %v181 = vpack.c.b16 %v159, %v158
    %v182 = vpack.c.b16 %v161, %v160
    %v183 = vpack.c.b16 %v163, %v162
    %v184 = vpack.c.b16 %v165, %v164
    %v185 = vpack.c.b16 %v167, %v166
    %v186 = vpack.c.b16 %v169, %v168
    %v187 = vpack.c.b16 %v171, %v170
    %204 = vmatpush.bf16.msra.mxu0 %v179
    %205 = vmatpush.bf16.msra.mxu0 %v178
    %206 = vmatpush.bf16.msra.mxu0 %v177
    %207 = vmatpush.bf16.msra.mxu0 %v176
    %208 = vmatpush.bf16.msra.mxu0 %v175
    %209 = vmatpush.bf16.msra.mxu0 %v174
    %210 = vmatpush.bf16.msra.mxu0 %v173
    %211 = vmatpush.bf16.msra.mxu0 %v172
    %212 = vmatmul.bf16.gmra.mxu0 %v70
    %v213 = vpop.f32.mrf.mxu0
    %v214 = vadd.f32 %v106, %v213
    %v215 = vpop.f32.mrf.mxu0
    %216 = vdwg.mxu0
    %217 = vmatpush.bf16.msra.mxu0 %v187
    %218 = vmatpush.bf16.msra.mxu0 %v186
    %219 = vmatpush.bf16.msra.mxu0 %v185
    %220 = vmatpush.bf16.msra.mxu0 %v184
    %221 = vmatpush.bf16.msra.mxu0 %v183
    %222 = vmatpush.bf16.msra.mxu0 %v182
    %223 = vmatpush.bf16.msra.mxu0 %v181
    %224 = vmatpush.bf16.msra.mxu0 %v180
    %225 = vmatmul.bf16.gmra.mxu0 %v71
    %v226 = vpop.f32.mrf.mxu0
    %v227 = vadd.f32 %v214, %v226
    %v228 = vpop.f32.mrf.mxu0
    %229 = vdwg.mxu0
    %v230 = vld [vmem:[%s3] sm:$0x1]
    %v231 = vld [vmem:[%s4] sm:$0x1]
    %232 = vadd.xlane.f32.xlu0 %v227
    %v233 = vpop.xlane.xlu0 %232
    %v234 = vmul.f32 %v233, 0.0078125
    %v235 = vmul.f32 %v227, %v227
    %236 = vadd.xlane.f32.xlu0 %v235
    %v237 = vpop.xlane.xlu0 %236
    %v238 = vmul.f32 %v237, 0.0078125
    %v239 = vmul.f32 %v234, %v234
    %v240 = vsub.f32 %v238, %v239
    %v241 = vmax.f32 %v240, 0.0
    %v242 = vsub.f32 %v227, %v234
    %v243 = vadd.f32 %v241, 1e-05
    %v244 = vrsqrt.pop %v243
    %v245 = vmul.f32 %v244, %v243
    %v246 = vmul.f32 %v245, %v244
    %v247 = vmul.f32 0.5, %v246
    %v248 = vsub.f32 1.5, %v247
    %v249 = vmul.f32 %v244, %v248
    %vm250 = vweird.f32 %v243
    %vm251 = vweird.f32 %v244
    %vm252 = vmor %vm250, %vm251
    %v253 = vsel %vm252, %v244, %v249
    %v254 = vmul.f32 %v242, %v253
    %v256 = vperm.slane %v230, 0
    %v258 = vmul.f32 %v254, %v256
    %v260 = vperm.slane %v231, 0
    %v262 = vadd.f32 %v258, %v260
    %v263 = vmul.f32 %v262, 0.2
    %v264 = vmax.f32 %v262, %v263
    %v265 = vpack.c.bf16 %v264, %v264
    %v266 = vld [vmem:[%s5] sm:$0xf]
    %v267 = vld [vmem:[%s5 + $0x4] sm:$0xf]
    %v268 = vld [vmem:[%s5 + $0x8] sm:$0xf]
    %v269 = vld [vmem:[%s5 + $0xc] sm:$0xf]
    %v270 = vld [vmem:[%s5 + $0x10] sm:$0xf]
    %v271 = vld [vmem:[%s5 + $0x14] sm:$0xf]
    %v272 = vld [vmem:[%s5 + $0x18] sm:$0xf]
    %v273 = vld [vmem:[%s5 + $0x1c] sm:$0xf]
    %v274 = vld [vmem:[%s5 + $0x20] sm:$0xf]
    %v275 = vld [vmem:[%s5 + $0x24] sm:$0xf]
    %v276 = vld [vmem:[%s5 + $0x28] sm:$0xf]
    %v277 = vld [vmem:[%s5 + $0x2c] sm:$0xf]
    %v278 = vld [vmem:[%s5 + $0x30] sm:$0xf]
    %v279 = vld [vmem:[%s5 + $0x34] sm:$0xf]
    %v280 = vld [vmem:[%s5 + $0x38] sm:$0xf]
    %v281 = vld [vmem:[%s5 + $0x3c] sm:$0xf]
    %v282 = vld [vmem:[%s6] sm:$0x1]
    %v284 = vperm.slane %v282, 0
    %v302 = vunpack.c.l.b16 %v266
    %v303 = vunpack.c.l.b16 %v267
    %v304 = vunpack.c.l.b16 %v268
    %v305 = vunpack.c.l.b16 %v269
    %v306 = vunpack.c.l.b16 %v270
    %v307 = vunpack.c.l.b16 %v271
    %v308 = vunpack.c.l.b16 %v272
    %v309 = vunpack.c.l.b16 %v273
    %v310 = vunpack.c.l.b16 %v274
    %v311 = vunpack.c.l.b16 %v275
    %v312 = vunpack.c.l.b16 %v276
    %v313 = vunpack.c.l.b16 %v277
    %v314 = vunpack.c.l.b16 %v278
    %v315 = vunpack.c.l.b16 %v279
    %v316 = vunpack.c.l.b16 %v280
    %v317 = vunpack.c.l.b16 %v281
    %v318 = vpack.c.b16 %v303, %v302
    %v319 = vpack.c.b16 %v305, %v304
    %v320 = vpack.c.b16 %v307, %v306
    %v321 = vpack.c.b16 %v309, %v308
    %v322 = vpack.c.b16 %v311, %v310
    %v323 = vpack.c.b16 %v313, %v312
    %v324 = vpack.c.b16 %v315, %v314
    %v325 = vpack.c.b16 %v317, %v316
    %334 = vmatpush.bf16.msra.mxu0 %v325
    %335 = vmatpush.bf16.msra.mxu0 %v324
    %336 = vmatpush.bf16.msra.mxu0 %v323
    %337 = vmatpush.bf16.msra.mxu0 %v322
    %338 = vmatpush.bf16.msra.mxu0 %v321
    %339 = vmatpush.bf16.msra.mxu0 %v320
    %340 = vmatpush.bf16.msra.mxu0 %v319
    %341 = vmatpush.bf16.msra.mxu0 %v318
    %342 = vmatmul.bf16.gmra.mxu0 %v265
    %v343 = vpop.f32.mrf.mxu0
    %v344 = vadd.f32 %v284, %v343
    %v345 = vpop.f32.mrf.mxu0
    %346 = vdwg.mxu0
    %v347 = vld [vmem:[%s7] sm:$0x1]
    %v348 = vld [vmem:[%s8] sm:$0x1]
    %vm349 = vcmask 523264
    %v350 = vsel %vm349, %v344, 0.0
    %351 = vadd.xlane.f32.xlu0 %v350
    %v352 = vpop.xlane.xlu0 %351
    %v353 = vmul.f32 %v352, 0.015625
    %v354 = vmul.f32 %v344, %v344
    %v355 = vsel %vm349, %v354, 0.0
    %356 = vadd.xlane.f32.xlu0 %v355
    %v357 = vpop.xlane.xlu0 %356
    %v358 = vmul.f32 %v357, 0.015625
    %v359 = vmul.f32 %v353, %v353
    %v360 = vsub.f32 %v358, %v359
    %v361 = vmax.f32 %v360, 0.0
    %v362 = vsub.f32 %v344, %v353
    %v363 = vadd.f32 %v361, 1e-05
    %v364 = vrsqrt.pop %v363
    %v365 = vmul.f32 %v364, %v363
    %v366 = vmul.f32 %v365, %v364
    %v367 = vmul.f32 0.5, %v366
    %v368 = vsub.f32 1.5, %v367
    %v369 = vmul.f32 %v364, %v368
    %vm370 = vweird.f32 %v363
    %vm371 = vweird.f32 %v364
    %vm372 = vmor %vm370, %vm371
    %v373 = vsel %vm372, %v364, %v369
    %v374 = vmul.f32 %v362, %v373
    %v376 = vperm.slane %v347, 0
    %v378 = vmul.f32 %v374, %v376
    %v380 = vperm.slane %v348, 0
    %v382 = vadd.f32 %v378, %v380
    %v383 = vmul.f32 %v382, 0.2
    %v384 = vmax.f32 %v382, %v383
    %v385 = vpack.c.bf16 %v384, %v384
    %v386 = vld [vmem:[%s9] sm:$0xf]
    %v387 = vld [vmem:[%s9 + $0x4] sm:$0xf]
    %v388 = vld [vmem:[%s9 + $0x8] sm:$0xf]
    %v389 = vld [vmem:[%s9 + $0xc] sm:$0xf]
    %v390 = vld [vmem:[%s9 + $0x10] sm:$0xf]
    %v391 = vld [vmem:[%s9 + $0x14] sm:$0xf]
    %v392 = vld [vmem:[%s9 + $0x18] sm:$0xf]
    %v393 = vld [vmem:[%s9 + $0x1c] sm:$0xf]
    %v394 = vld [vmem:[%s10] sm:$0x1]
    %v396 = vperm.slane %v394, 0
    %v406 = vunpack.c.l.b16 %v386
    %v407 = vunpack.c.l.b16 %v387
    %v408 = vunpack.c.l.b16 %v388
    %v409 = vunpack.c.l.b16 %v389
    %v410 = vunpack.c.l.b16 %v390
    %v411 = vunpack.c.l.b16 %v391
    %v412 = vunpack.c.l.b16 %v392
    %v413 = vunpack.c.l.b16 %v393
    %v414 = vpack.c.b16 %v407, %v406
    %v415 = vpack.c.b16 %v409, %v408
    %v416 = vpack.c.b16 %v411, %v410
    %v417 = vpack.c.b16 %v413, %v412
    %v423 = vsel %vm349, %v385, 0
    %425 = vmatpush.bf16.msra.mxu0 0
    %426 = vmatpush.bf16.msra.mxu0 0
    %427 = vmatpush.bf16.msra.mxu0 0
    %428 = vmatpush.bf16.msra.mxu0 0
    %429 = vmatpush.bf16.msra.mxu0 %v417
    %430 = vmatpush.bf16.msra.mxu0 %v416
    %431 = vmatpush.bf16.msra.mxu0 %v415
    %432 = vmatpush.bf16.msra.mxu0 %v414
    %433 = vmatmul.bf16.gmra.mxu0 %v423
    %v434 = vpop.f32.mrf.mxu0
    %v435 = vadd.f32 %v396, %v434
    %v436 = vpop.f32.mrf.mxu0
    %437 = vdwg.mxu0
    %v438 = vld [vmem:[%s11] sm:$0x1]
    %v439 = vld [vmem:[%s12] sm:$0x1]
    %vm440 = vcmask 261120
    %v441 = vsel %vm440, %v435, 0.0
    %442 = vadd.xlane.f32.xlu0 %v441
    %v443 = vpop.xlane.xlu0 %442
    %v444 = vmul.f32 %v443, 0.03125
    %v445 = vmul.f32 %v435, %v435
    %v446 = vsel %vm440, %v445, 0.0
    %447 = vadd.xlane.f32.xlu0 %v446
    %v448 = vpop.xlane.xlu0 %447
    %v449 = vmul.f32 %v448, 0.03125
    %v450 = vmul.f32 %v444, %v444
    %v451 = vsub.f32 %v449, %v450
    %v452 = vmax.f32 %v451, 0.0
    %v453 = vsub.f32 %v435, %v444
    %v454 = vadd.f32 %v452, 1e-05
    %v455 = vrsqrt.pop %v454
    %v456 = vmul.f32 %v455, %v454
    %v457 = vmul.f32 %v456, %v455
    %v458 = vmul.f32 0.5, %v457
    %v459 = vsub.f32 1.5, %v458
    %v460 = vmul.f32 %v455, %v459
    %vm461 = vweird.f32 %v454
    %vm462 = vweird.f32 %v455
    %vm463 = vmor %vm461, %vm462
    %v464 = vsel %vm463, %v455, %v460
    %v465 = vmul.f32 %v453, %v464
    %v467 = vperm.slane %v438, 0
    %v469 = vmul.f32 %v465, %v467
    %v471 = vperm.slane %v439, 0
    %v473 = vadd.f32 %v469, %v471
    %v474 = vmul.f32 %v473, 0.2
    %v475 = vmax.f32 %v473, %v474
    %v476 = vpack.c.bf16 %v475, %v475
    %v477 = vld [vmem:[%s13] sm:$0xf]
    %v478 = vld [vmem:[%s13 + $0x4] sm:$0xf]
    %v479 = vld [vmem:[%s13 + $0x8] sm:$0xf]
    %v480 = vld [vmem:[%s13 + $0xc] sm:$0xf]
    %v481 = vld [vmem:[%s14] sm:$0x1]
    %v483 = vperm.slane %v481, 0
    %v489 = vunpack.c.l.b16 %v477
    %v490 = vunpack.c.l.b16 %v478
    %v491 = vunpack.c.l.b16 %v479
    %v492 = vunpack.c.l.b16 %v480
    %v493 = vpack.c.b16 %v490, %v489
    %v494 = vpack.c.b16 %v492, %v491
    %v498 = vsel %vm440, %v476, 0
    %500 = vmatpush.bf16.msra.mxu0 0
    %501 = vmatpush.bf16.msra.mxu0 0
    %502 = vmatpush.bf16.msra.mxu0 0
    %503 = vmatpush.bf16.msra.mxu0 0
    %504 = vmatpush.bf16.msra.mxu0 0
    %505 = vmatpush.bf16.msra.mxu0 0
    %506 = vmatpush.bf16.msra.mxu0 %v494
    %507 = vmatpush.bf16.msra.mxu0 %v493
    %508 = vmatmul.bf16.gmra.mxu0 %v498
    %v509 = vpop.f32.mrf.mxu0
    %v510 = vadd.f32 %v483, %v509
    %v511 = vpop.f32.mrf.mxu0
    %512 = vdwg.mxu0
    %513 = vxpose.xlu0.b32.start [1/16] %v510, 128
    %514 = vxpose.xlu0.b32.cont [2/16] 0.0, 128
    %515 = vxpose.xlu0.b32.cont [3/16] 0.0, 128
    %516 = vxpose.xlu0.b32.cont [4/16] 0.0, 128
    %517 = vxpose.xlu0.b32.cont [5/16] 0.0, 128
    %518 = vxpose.xlu0.b32.cont [6/16] 0.0, 128
    %519 = vxpose.xlu0.b32.cont [7/16] 0.0, 128
    %520 = vxpose.xlu0.b32.cont [8/16] 0.0, 128
    %521 = vxpose.xlu0.b32.cont [9/16] 0.0, 128
    %522 = vxpose.xlu0.b32.cont [10/16] 0.0, 128
    %523 = vxpose.xlu0.b32.cont [11/16] 0.0, 128
    %524 = vxpose.xlu0.b32.cont [12/16] 0.0, 128
    %525 = vxpose.xlu0.b32.cont [13/16] 0.0, 128
    %526 = vxpose.xlu0.b32.cont [14/16] 0.0, 128
    %527 = vxpose.xlu0.b32.cont [15/16] 0.0, 128
    %528 = vxpose.xlu0.b32.end [16/16] 0.0, 128
    %v529 = vpop.trf.xlu0
    %v530 = vpop.trf.xlu0
    %v531 = vpop.trf.xlu0
    %v532 = vpop.trf.xlu0
    %v533 = vpop.trf.xlu0
    %v534 = vpop.trf.xlu0
    %v535 = vpop.trf.xlu0
    %v536 = vpop.trf.xlu0
    %v537 = vpop.trf.xlu0
    %v538 = vpop.trf.xlu0
    %v539 = vpop.trf.xlu0
    %v540 = vpop.trf.xlu0
    %v541 = vpop.trf.xlu0
    %v542 = vpop.trf.xlu0
    %v543 = vpop.trf.xlu0
    %v544 = vpop.trf.xlu0
    %vm545 = vcmask 57344
    %546 = vst.msk [vmem:[#allocation5] sm:$0x1] %vm545, %v529
    // Predicated region
    $region66: #{tpu_custom_call.1} parent=1 // pred_check
      _
    $region67: #{tpu_custom_call.1} parent=1 // pred_check_branch
      %548 = sbr.rel (0) target = $region69
    $region68: #{tpu_custom_call.1} parent=1 // pred_region
      %550 = vsyncadd [#allocation4], 0
      %s552 = sshll.u32 [#allocation5], 4
      %s553 = int_to_ptr.vmem [resolvable:$true] %s552
      %s554 = sshll.u32 %s15, 4
      %s555 = int_to_ptr.hbm [resolvable:$true] %s554
      %557 = dma.vmem_to_hbm [thread:$0]  %s553, 16, %s555, [#allocation4]
    $region69: #{tpu_custom_call.1} parent=1 // pred_fallthru
      _
    // Predicated region
    $region70: #{tpu_custom_call.1} parent=1 // pred_check
      _
    $region71: #{tpu_custom_call.1} parent=1 // pred_check_branch
      %559 = sbr.rel (0) target = $region73
    $region72: #{tpu_custom_call.1} parent=1 // pred_region
      %561 = dma.done [#allocation4], 16
    $region73: #{tpu_custom_call.1} parent=1 // pred_fallthru
      _
    %562 = vsyncpa [#allocation3], 1
    %563 = vsyncpa [#allocation4], 1

</llo_original>
